<compile_context>
chip_gen: v6e
topology: v6e:2x2x1
jax: 0.10.0
libtpu: 0.0.40
codegen_flags: <defaults>
</compile_context>

<pallas_src>
import functools
from math import sqrt

import jax
import jax.numpy as jnp
from jax.experimental import pallas as pl
from jax.experimental.pallas import tpu as pltpu


def _round_up(n, m):
    return ((n + m - 1) // m) * m


def _cdiv(a, b):
    return (a + b - 1) // b


def _gating_kernel(x_ref, w_ref, bias_ref, o_ref, *, tn, ncol):
    """One (batch-tile, col-tile): gates = sigmoid(x @ Wcol + bcol); out = xcol*gates."""
    x = x_ref[...]                                           # (TB, D), input dtype
    # bf16 operands into the MXU, f32 accumulation.
    gates = jnp.dot(x.astype(jnp.bfloat16), w_ref[...],
                    preferred_element_type=jnp.float32)      # (TB, TN)
    gates = jax.nn.sigmoid(gates + bias_ref[...])            # EUP sigmoid, f32
    if ncol == 1:
        x_cols = x                                           # full width, no reslice
    else:
        col0 = pl.multiple_of(pl.program_id(1) * tn, tn)
        x_cols = x_ref[:, pl.ds(col0, tn)]                   # (TB, TN) slice of x
    o_ref[...] = (x_cols * gates).astype(o_ref.dtype)        # single fused store


def _choose_tiles(B, D, itemsize):
    """Pick (batch tile, W-column tile) from static shapes."""
    # Column tile: bound the resident bf16 W per step (matters on v7x 64 MiB VMEM).
    tn = D
    if D * D * 2 > (16 << 20) and D % 128 == 0:
        for cand in (2048, 1024, 512, 256, 128):
            if D % cand == 0:
                tn = cand
                break
    # Batch tile: target >= ~2 MiB per x tile so grid steps aren't overhead
    # dominated; keep it sublane-aligned and clamp to the batch.
    row_align = 8 if itemsize >= 4 else 16
    target_rows = (2 << 20) // max(1, D * itemsize)
    tb = max(row_align, min(4096, _round_up(max(1, target_rows), 256)))
    tb = min(tb, _round_up(B, row_align))
    # At least 2 batch grid steps so v7x's two TensorCores both get work.
    if _cdiv(B, tb) < 2 and tb > row_align:
        tb = max(row_align, _round_up(tb // 2, row_align))
    return tb, tn


@jax.jit
def gating_context(x, w, scale, bias):
    """x: (B, D); w: (D, D); scale/bias: (D,) folded BN params (scale=1 if no BN)."""
    B, D = x.shape
    itemsize_x = jnp.dtype(x.dtype).itemsize

    # Fold BN scale into the weight once in the wrapper (O(D^2), not O(B*D^2)),
    # then cast to bf16 for the MXU (halves W HBM traffic and VMEM footprint).
    w_folded = (w.astype(jnp.float32) * scale.astype(jnp.float32)[None, :]
                ).astype(jnp.bfloat16)
    bias2 = bias.reshape(1, D).astype(jnp.float32)

    tb, tn = _choose_tiles(B, D, itemsize_x)
    n_b = _cdiv(B, tb)                 # partial last block is clipped by Pallas
    ncol = D // tn

    # VMEM accounting (includes kernel intermediates).
    w_bufs = 1 if ncol == 1 else 2
    vmem_needed = (2 * tb * D * itemsize_x       # x tiles (double-buffered)
                   + tb * D * 2                  # in-kernel bf16 cast of x
                   + 2 * tb * tn * 4             # f32 gates (MXU result + sigmoid)
                   + 2 * tb * tn * itemsize_x    # out tiles (double-buffered)
                   + w_bufs * D * tn * 2         # bf16 W
                   + 2 * tn * 4)                 # bias
    try:
        vmem_cap = int(pltpu.get_tpu_info().vmem_capacity_bytes)
    except Exception:
        vmem_cap = 64 << 20                      # conservative (v7x per-TC VMEM)
    vmem_limit = int(min(max(vmem_needed + (2 << 20), 32 << 20), vmem_cap))

    cost = pl.CostEstimate(
        flops=2 * B * D * D,
        transcendentals=B * D,
        bytes_accessed=(2 * B * D * itemsize_x   # read x, write out (no padding)
                        + D * D * 2              # bf16 W
                        + D * 4),                # bias
    )

    if ncol == 1:
        # Constant index maps -> single-buffer W and bias (second buffer is waste).
        w_spec = pl.BlockSpec((D, tn), lambda i, j: (0, j),
                              pipeline_mode=pl.Buffered(1))
        b_spec = pl.BlockSpec((1, tn), lambda i, j: (0, j),
                              pipeline_mode=pl.Buffered(1))
    else:
        # Column-streamed W: keep default double-buffering for DMA/compute overlap.
        w_spec = pl.BlockSpec((D, tn), lambda i, j: (0, j))
        b_spec = pl.BlockSpec((1, tn), lambda i, j: (0, j))

    kernel = functools.partial(_gating_kernel, tn=tn, ncol=ncol)

    return pl.pallas_call(
        kernel,
        out_shape=jax.ShapeDtypeStruct((B, D), x.dtype),
        grid_spec=pltpu.PrefetchScalarGridSpec(
            num_scalar_prefetch=0,
            grid=(n_b, ncol),
            in_specs=[
                pl.BlockSpec((tb, D), lambda i, j: (i, 0)),   # x tile, reused over j
                w_spec,                                       # folded W columns
                b_spec,                                       # folded BN bias columns
            ],
            out_specs=pl.BlockSpec((tb, tn), lambda i, j: (i, j)),
        ),
        compiler_params=pltpu.CompilerParams(
            dimension_semantics=("parallel", "arbitrary"),
            vmem_limit_bytes=vmem_limit,
        ),
        cost_estimate=cost,
    )(x, w_folded, bias2)


def make_params(key, dim, add_batch_norm=True):
    """Deterministic synthetic parameters mirroring GatingContext.__init__."""
    k_w, k_b, k_g, k_be, k_m, k_v = jax.random.split(key, 6)
    w = (1.0 / sqrt(dim)) * jax.random.normal(k_w, (dim, dim), jnp.float32)
    if add_batch_norm:
        # BatchNorm1d params + running stats (inference mode), then fold:
        gamma = 1.0 + 0.1 * jax.random.normal(k_g, (dim,), jnp.float32)
        beta = 0.1 * jax.random.normal(k_be, (dim,), jnp.float32)
        running_mean = 0.1 * jax.random.normal(k_m, (dim,), jnp.float32)
        running_var = jnp.abs(1.0 + 0.1 * jax.random.normal(k_v, (dim,), jnp.float32))
        eps = 1e-5
        scale = gamma / jnp.sqrt(running_var + eps)
        bias = beta - running_mean * scale
    else:
        scale = jnp.ones((dim,), jnp.float32)
        bias = (1.0 / sqrt(dim)) * jax.random.normal(k_b, (dim,), jnp.float32)
    return w, scale, bias


def gating_context_ref(x, w, scale, bias):
    """Pure-JAX f32 reference."""
    gates = x @ (w * scale[None, :])
    gates = gates + bias[None, :]
    gates = jax.nn.sigmoid(gates)
    return x * gates


if __name__ == "__main__":
    key = jax.random.PRNGKey(0)
    B, D = 16, 128
    kx, kp = jax.random.split(key)
    x = jax.random.normal(kx, (B, D), jnp.float32)
    w, scale, bias = make_params(kp, D, add_batch_norm=True)

    out = gating_context(x, w, scale, bias)
    out = jax.block_until_ready(out)

    ref = gating_context_ref(x, w, scale, bias)
    assert out.shape == (B, D) and out.dtype == jnp.float32
    # bf16 MXU operands with f32 accumulation -> relaxed tolerance vs f32 ref.
    assert jnp.allclose(out, ref, atol=2e-2, rtol=2e-2), \
        f"max err {jnp.max(jnp.abs(out - ref))}"

    # Ragged-batch path (B not a multiple of the tile): partial last block,
    # no wrapper-side padding copy.
    B2 = 19
    x2 = jax.random.normal(jax.random.PRNGKey(1), (B2, D), jnp.float32)
    out2 = jax.block_until_ready(gating_context(x2, w, scale, bias))
    ref2 = gating_context_ref(x2, w, scale, bias)
    assert out2.shape == (B2, D)
    assert jnp.allclose(out2, ref2, atol=2e-2, rtol=2e-2), \
        f"max err (ragged) {jnp.max(jnp.abs(out2 - ref2))}"

    print("KERNEL_OK")
</pallas_src>

<mosaic_0001>
module attributes {stable_mosaic.version = 11 : i64} {
  func.func @_gating_kernel(%arg0: i32, %arg1: i32, %arg2: memref<8x128xf32, #tpu.memory_space<vmem>>, %arg3: memref<128x128xbf16, #tpu.memory_space<vmem>>, %arg4: memref<1x128xf32, #tpu.memory_space<vmem>>, %arg5: memref<8x128xf32, #tpu.memory_space<vmem>>) attributes {dimension_semantics = [#tpu.dimension_semantics<parallel>, #tpu.dimension_semantics<arbitrary>], iteration_bounds = array<i64: 2, 1>, scalar_prefetch = 0 : i64, scratch_operands = 0 : i64, tpu.core_type = #tpu.core_type<tc>, window_params = [{transform_indices = @transform_0, window_bounds = array<i64: 8, 128>}, {pipeline_mode = #tpu.pipeline_mode<synchronous>, transform_indices = @transform_1, window_bounds = array<i64: 128, 128>}, {pipeline_mode = #tpu.pipeline_mode<synchronous>, transform_indices = @transform_2, window_bounds = array<i64: 1, 128>}, {transform_indices = @transform_3, window_bounds = array<i64: 8, 128>}]} {
    %c0 = arith.constant 0 : index
    %c0_0 = arith.constant 0 : index
    %0 = vector.load %arg2[%c0, %c0_0] : memref<8x128xf32, #tpu.memory_space<vmem>>, vector<8x128xf32>
    %1 = arith.truncf %0 : vector<8x128xf32> to vector<8x128xbf16>
    %c0_1 = arith.constant 0 : index
    %c0_2 = arith.constant 0 : index
    %2 = vector.load %arg3[%c0_1, %c0_2] : memref<128x128xbf16, #tpu.memory_space<vmem>>, vector<128x128xbf16>
    %cst = arith.constant dense<0.000000e+00> : vector<8x128xf32>
    %3 = tpu.matmul %1, %2, %cst {dimension_numbers = #tpu.dot_dimension_numbers<[1], [0], [0], [1], [0, 0, 1, 1], [], []>} : vector<8x128xbf16>, vector<128x128xbf16>, vector<8x128xf32> -> vector<8x128xf32>
    %c0_3 = arith.constant 0 : index
    %c0_4 = arith.constant 0 : index
    %4 = vector.load %arg4[%c0_3, %c0_4] : memref<1x128xf32, #tpu.memory_space<vmem>>, vector<1x128xf32>
    %5 = vector.broadcast %4 : vector<1x128xf32> to vector<8x128xf32>
    %6 = arith.addf %3, %5 : vector<8x128xf32>
    %7 = arith.negf %6 : vector<8x128xf32>
    %8 = math.exp %7 : vector<8x128xf32>
    %cst_5 = arith.constant 1.000000e+00 : f32
    %9 = vector.broadcast %cst_5 : f32 to vector<8x128xf32>
    %10 = arith.addf %9, %8 : vector<8x128xf32>
    %11 = arith.divf %9, %10 : vector<8x128xf32>
    %12 = arith.mulf %0, %11 : vector<8x128xf32>
    %c0_6 = arith.constant 0 : index
    %c0_7 = arith.constant 0 : index
    %13 = vector.load %arg5[%c0_6, %c0_7] : memref<8x128xf32, #tpu.memory_space<vmem>>, vector<8x128xf32>
    tpu.vector_store %arg5[%c0_6, %c0_7], %12 {strides = array<i32>} : memref<8x128xf32, #tpu.memory_space<vmem>>, vector<8x128xf32>,
    return
  }
  func.func @transform_0(%arg0: i32, %arg1: i32) -> (i32, i32) {
    %c0_i32 = arith.constant 0 : i32
    %c0_i32_0 = arith.constant 0 : i32
    return %arg0, %c0_i32 : i32, i32
  }
  func.func @transform_1(%arg0: i32, %arg1: i32) -> (i32, i32) {
    %c0_i32 = arith.constant 0 : i32
    %c0_i32_0 = arith.constant 0 : i32
    return %c0_i32, %arg1 : i32, i32
  }
  func.func @transform_2(%arg0: i32, %arg1: i32) -> (i32, i32) {
    %c0_i32 = arith.constant 0 : i32
    %c0_i32_0 = arith.constant 0 : i32
    return %c0_i32, %arg1 : i32, i32
  }
  func.func @transform_3(%arg0: i32, %arg1: i32) -> (i32, i32) {
    %c0_i32 = arith.constant 0 : i32
    return %arg0, %arg1 : i32, i32
  }
}

</mosaic_0001>

<llo_original>
// kernel: gating_context.1
$region0: #{gating_context.1}
  #allocation0 [shape = 'u32[]', space=smem, size = 0x4, offset = 0x4, fixed_abs, tag = 'smem constant byte address 0x4 - core index']
  #allocation1 [shape = 'u32[144,128]{1,0:T(1,128)}', space=vmem, size = 0x12000, scoped, tag = 'internal scratch']
  %s0 = inlined_call_operand.vmem [shape: f32[16,128], index: 0, kind: input, shape index: {}]
  %s1 = inlined_call_operand.vmem [shape: bf16[128,128], index: 1, kind: input, shape index: {}]
  %s2 = inlined_call_operand.vmem [shape: f32[1,128], index: 2, kind: input, shape index: {}]
  %s3 = inlined_call_operand.hbm [shape: f32[16,128], index: 3, kind: output, shape index: {}]
  %s4 = sld [smem:[#allocation0]]
  $region45: #{gating_context.1} parent=0
    _
  %s6 = ssub.s32 1, %s4
  %s7 = scalar_select 0, %s6, %s4
  $region1: #{gating_context.1} parent=0
    #allocation2 [shape = 'u8[8192]{0}', space=vmem, size = 0x2000, scoped, tag = 'output window, operand 0']
    #allocation3 [shape = 's32[2]{0}', space=sflag, size = 0x8, scoped, tag = 'scoped memory for gating_context.1']
    %8 = vsyncpa [#allocation3], 0
    %s9 = scalar_lea.sflag [#allocation3], 1
    %10 = vsyncpa %s9, 0
    loop: start=0, step=1, limit=4
    $region2: #{gating_context.1} parent=1 // loop_pre_header
      _
    $region3: #{gating_context.1} parent=1 // loop_header
      %s12 = sphi 0, %s16
      %p13 = scmp.ge.s32.totalorder %s12, 4
      %s19 = sphi 0, %s31
      %s20 = sphi 0, %s27
      %s21 = sphi 0, %s19
      %s22 = sphi 0, %s20
      %s23 = sphi 0, %s21
      %s24 = sphi 0, %s22
      %s34 = sphi 0, %s36
      %s37 = sphi 0, %s34
      %s38 = sphi 0, %s37
      %s54 = sphi 0, %s38
      %s60 = sphi 0, %s62
      %s63 = sphi 0, %s60
      %s64 = sphi 0, %s63
      %s80 = sphi 0, %s64
      %s86 = sphi 0, %s88
      %s89 = sphi 0, %s86
      %s90 = sphi 0, %s89
      %s106 = sphi 0, %s90
      %s114 = sphi 0, %s116
      %s117 = sphi 0, %s114
      %s118 = sphi 0, %s117
      %s134 = sphi 0, %s118
    $region4: #{gating_context.1} parent=1 // loop_header_branch
      %15 = sbr.rel (%p13) target = $region8
    $region5: #{gating_context.1} parent=1 // loop_body
      %s17 = ssub.s32 %s12, 1
      %s18 = ssub.s32 %s12, 2
      %s25 = sadd.s32 1, %s20
      %p26 = scmp.ge.s32.totalorder %s25, 1
      %s27 = scalar_select %p26, 0, %s25
      %s28 = sadd.s32 1, %s19
      %s29 = scalar_select %p26, %s28, %s19
      %p30 = scmp.ge.s32.totalorder %s29, 2
      %s31 = scalar_select %p30, 0, %s29
      %s32 = ssub.s32 %s19, %s31
      %p33 = scmp.eq.s32.totalorder %s32, 0
      %s35 = sadd.s32 %s34, 1
      %s36 = scalar_select %p33, %s34, %s35
      %p39 = pneg %p33
      %p40 = scmp.eq.s32.totalorder %s12, 1
      %p41 = por %p39, %p40
      %p42 = scmp.ne.s32.totalorder %s34, %s37
      %p43 = scmp.eq.s32.totalorder %s12, 0
      %p44 = por %p42, %p43
      %p45 = scmp.ne.s32.totalorder %s34, %s37
      %p46 = scmp.eq.s32.totalorder %s17, 1
      %p47 = por %p45, %p46
      %p48 = scmp.ne.s32.totalorder %s37, %s38
      %p49 = scmp.eq.s32.totalorder %s17, 0
      %p50 = por %p48, %p49
      %p51 = scmp.ne.s32.totalorder %s37, %s38
      %p52 = scmp.eq.s32.totalorder %s18, 1
      %p53 = por %p51, %p52
      %p55 = scmp.ne.s32.totalorder %s38, %s54
      %p56 = scmp.eq.s32.totalorder %s18, 0
      %p57 = por %p55, %p56
      %s58 = ssub.s32 %s20, %s27
      %p59 = scmp.eq.s32.totalorder %s58, 0
      %s61 = sadd.s32 %s60, 1
      %s62 = scalar_select %p59, %s60, %s61
      %p65 = pneg %p59
      %p66 = scmp.eq.s32.totalorder %s12, 1
      %p67 = por %p65, %p66
      %p68 = scmp.ne.s32.totalorder %s60, %s63
      %p69 = scmp.eq.s32.totalorder %s12, 0
      %p70 = por %p68, %p69
      %p71 = scmp.ne.s32.totalorder %s60, %s63
      %p72 = scmp.eq.s32.totalorder %s17, 1
      %p73 = por %p71, %p72
      %p74 = scmp.ne.s32.totalorder %s63, %s64
      %p75 = scmp.eq.s32.totalorder %s17, 0
      %p76 = por %p74, %p75
      %p77 = scmp.ne.s32.totalorder %s63, %s64
      %p78 = scmp.eq.s32.totalorder %s18, 1
      %p79 = por %p77, %p78
      %p81 = scmp.ne.s32.totalorder %s64, %s80
      %p82 = scmp.eq.s32.totalorder %s18, 0
      %p83 = por %p81, %p82
      %s84 = ssub.s32 %s20, %s27
      %p85 = scmp.eq.s32.totalorder %s84, 0
      %s87 = sadd.s32 %s86, 1
      %s88 = scalar_select %p85, %s86, %s87
      %p91 = pneg %p85
      %p92 = scmp.eq.s32.totalorder %s12, 1
      %p93 = por %p91, %p92
      %p94 = scmp.ne.s32.totalorder %s86, %s89
      %p95 = scmp.eq.s32.totalorder %s12, 0
      %p96 = por %p94, %p95
      %p97 = scmp.ne.s32.totalorder %s86, %s89
      %p98 = scmp.eq.s32.totalorder %s17, 1
      %p99 = por %p97, %p98
      %p100 = scmp.ne.s32.totalorder %s89, %s90
      %p101 = scmp.eq.s32.totalorder %s17, 0
      %p102 = por %p100, %p101
      %p103 = scmp.ne.s32.totalorder %s89, %s90
      %p104 = scmp.eq.s32.totalorder %s18, 1
      %p105 = por %p103, %p104
      %p107 = scmp.ne.s32.totalorder %s90, %s106
      %p108 = scmp.eq.s32.totalorder %s18, 0
      %p109 = por %p107, %p108
      %s110 = ssub.s32 %s19, %s31
      %s111 = ssub.s32 %s20, %s27
      %s112 = sor.u32 %s110, %s111
      %p113 = scmp.eq.s32.totalorder %s112, 0
      %s115 = sadd.s32 %s114, 1
      %s116 = scalar_select %p113, %s114, %s115
      %p119 = pneg %p113
      %p120 = scmp.eq.s32.totalorder %s12, 1
      %p121 = por %p119, %p120
      %p122 = scmp.ne.s32.totalorder %s114, %s117
      %p123 = scmp.eq.s32.totalorder %s12, 0
      %p124 = por %p122, %p123
      %p125 = scmp.ne.s32.totalorder %s114, %s117
      %p126 = scmp.eq.s32.totalorder %s17, 1
      %p127 = por %p125, %p126
      %p128 = scmp.ne.s32.totalorder %s117, %s118
      %p129 = scmp.eq.s32.totalorder %s17, 0
      %p130 = por %p128, %p129
      %p131 = scmp.ne.s32.totalorder %s117, %s118
      %p132 = scmp.eq.s32.totalorder %s18, 1
      %p133 = por %p131, %p132
      %p135 = scmp.ne.s32.totalorder %s118, %s134
      %p136 = scmp.eq.s32.totalorder %s18, 0
      %p137 = por %p135, %p136
      %p138 = scmp.le.s32.totalorder 1, %s12
      %p139 = scmp.lt.s32.totalorder %s12, 3
      %p140 = pnand %p138, %p139
      %p141 = pneg %p140
      // Predicated region
      $region9: #{gating_context.1} parent=5 // pred_check
        _
      $region10: #{gating_context.1} parent=5 // pred_check_branch
        %143 = sbr.rel (%p140) target = $region12
      $region11: #{gating_context.1} parent=5 // pred_region
        %s144 = ssub.s32 %s12, 1
        // Predicated region
        $region13: #{gating_context.1} parent=11 // pred_check
          %p145 = pneg %p76
        $region14: #{gating_context.1} parent=11 // pred_check_branch
          %147 = sbr.rel (%p145) target = $region16
        $region15: #{gating_context.1} parent=11 // pred_region
          %p148 = scmp.lt.s32.totalorder %s22, 0
          %s149 = scalar_select %p148, %s22, 0
          %s150 = smul.addr %s149, 4
          %s151 = scalar_lea.vmem %s1, %s150
        $region16: #{gating_context.1} parent=11 // pred_fallthru
          _
        // Predicated region
        $region17: #{gating_context.1} parent=11 // pred_check
          %p152 = pneg %p102
        $region18: #{gating_context.1} parent=11 // pred_check_branch
          %154 = sbr.rel (%p152) target = $region20
        $region19: #{gating_context.1} parent=11 // pred_region
          %p155 = scmp.lt.s32.totalorder %s22, 0
          %s156 = scalar_select %p155, %s22, 0
          %s157 = scalar_lea.vmem %s2, %s156
        $region20: #{gating_context.1} parent=11 // pred_fallthru
          _
      $region12: #{gating_context.1} parent=5 // pred_fallthru
        _
      %p158 = scmp.lt.s32.totalorder %s12, 2
      // Predicated region
      $region21: #{gating_context.1} parent=5 // pred_check
        %p159 = pneg %p158
      $region22: #{gating_context.1} parent=5 // pred_check_branch
        %161 = sbr.rel (%p159) target = $region24
      $region23: #{gating_context.1} parent=5 // pred_region
        // Predicated region
        $region25: #{gating_context.1} parent=23 // pred_check
          %p162 = pneg %p44
        $region26: #{gating_context.1} parent=23 // pred_check_branch
          %164 = sbr.rel (%p162) target = $region28
        $region27: #{gating_context.1} parent=23 // pred_region
          %p165 = scmp.lt.s32.totalorder %s19, 1
          %s166 = scalar_select %p165, %s19, 1
          %s167 = smul.addr %s166, 8
          %s168 = scalar_lea.vmem %s0, %s167
        $region28: #{gating_context.1} parent=23 // pred_fallthru
          _
      $region24: #{gating_context.1} parent=5 // pred_fallthru
        _
      %p169 = scmp.le.s32.totalorder 1, %s12
      %p170 = scmp.lt.s32.totalorder %s12, 3
      %p171 = pnand %p169, %p170
      %p172 = pneg %p171
      // Predicated region
      $region29: #{gating_context.1} parent=5 // pred_check
        _
      $region30: #{gating_context.1} parent=5 // pred_check_branch
        %174 = sbr.rel (%p171) target = $region32
      $region31: #{gating_context.1} parent=5 // pred_region
        %s175 = ssub.s32 %s12, 1
        %p176 = scmp.lt.s32.totalorder %s21, 1
        %s177 = scalar_select %p176, %s21, 1
        %s178 = smul.addr %s177, 8
        %s179 = scalar_lea.vmem %s0, %s178
        %p180 = pneg %p50
        %p181 = pneg %p47
        %p182 = scmp.lt.s32.totalorder %s22, 0
        %s183 = scalar_select %p182, %s22, 0
        %s184 = smul.addr %s183, 4
        %s185 = scalar_lea.vmem %s1, %s184
        %p186 = pneg %p76
        %p187 = pneg %p73
        %p188 = scmp.lt.s32.totalorder %s22, 0
        %s189 = scalar_select %p188, %s22, 0
        %s190 = scalar_lea.vmem %s2, %s189
        %p191 = pneg %p102
        %p192 = pneg %p99
        %p193 = pneg %p130
        %p194 = pneg %p127
        %s195 = sand.u32 %s117, 1
        %s196 = scalar_lea.sflag [#allocation3], %s195
        %s197 = sand.u32 %s117, 1
        %s198 = smul.addr %s197, 8
        %s199 = scalar_lea.vmem [#allocation2], %s198
        %p200 = scmp.lt.s32.totalorder %s21, 1
        %s201 = scalar_select %p200, %s21, 1
        %s202 = smul.addr %s201, 8
        %s203 = scalar_lea.vmem %s0, %s202
        %p204 = scmp.lt.s32.totalorder %s22, 0
        %s205 = scalar_select %p204, %s22, 0
        %s206 = smul.addr %s205, 4
        %s207 = scalar_lea.vmem %s1, %s206
        %p208 = scmp.lt.s32.totalorder %s22, 0
        %s209 = scalar_select %p208, %s22, 0
        %s210 = scalar_lea.vmem %s2, %s209
        %v212 = vld [vmem:[%s203] sm:$0xff]
        %v213 = vpack.c.bf16 %v212, %v212
        %v214 = vld [vmem:[%s207] sm:$0xf]
        %v215 = vld [vmem:[%s207 + $0x4] sm:$0xf]
        %v216 = vld [vmem:[%s207 + $0x8] sm:$0xf]
        %v217 = vld [vmem:[%s207 + $0xc] sm:$0xf]
        %v218 = vld [vmem:[%s207 + $0x10] sm:$0xf]
        %v219 = vld [vmem:[%s207 + $0x14] sm:$0xf]
        %v220 = vld [vmem:[%s207 + $0x18] sm:$0xf]
        %v221 = vld [vmem:[%s207 + $0x1c] sm:$0xf]
        %v222 = vld [vmem:[%s207 + $0x20] sm:$0xf]
        %v223 = vld [vmem:[%s207 + $0x24] sm:$0xf]
        %v224 = vld [vmem:[%s207 + $0x28] sm:$0xf]
        %v225 = vld [vmem:[%s207 + $0x2c] sm:$0xf]
        %v226 = vld [vmem:[%s207 + $0x30] sm:$0xf]
        %v227 = vld [vmem:[%s207 + $0x34] sm:$0xf]
        %v228 = vld [vmem:[%s207 + $0x38] sm:$0xf]
        %v229 = vld [vmem:[%s207 + $0x3c] sm:$0xf]
        %v230 = vld [vmem:[%s210] sm:$0x1]
        %v232 = vlaneseq
        %v233 = vshrl.u32 %v232, 7
        %v234 = vsub.s32 0, %v233
        %v235 = vrot.slane %v230, %v234
        %v253 = vunpack.c.l.b16 %v214
        %v254 = vunpack.c.l.b16 %v215
        %v255 = vunpack.c.l.b16 %v216
        %v256 = vunpack.c.l.b16 %v217
        %v257 = vunpack.c.l.b16 %v218
        %v258 = vunpack.c.l.b16 %v219
        %v259 = vunpack.c.l.b16 %v220
        %v260 = vunpack.c.l.b16 %v221
        %v261 = vunpack.c.l.b16 %v222
        %v262 = vunpack.c.l.b16 %v223
        %v263 = vunpack.c.l.b16 %v224
        %v264 = vunpack.c.l.b16 %v225
        %v265 = vunpack.c.l.b16 %v226
        %v266 = vunpack.c.l.b16 %v227
        %v267 = vunpack.c.l.b16 %v228
        %v268 = vunpack.c.l.b16 %v229
        %v269 = vpack.c.b16 %v254, %v253
        %v270 = vpack.c.b16 %v256, %v255
        %v271 = vpack.c.b16 %v258, %v257
        %v272 = vpack.c.b16 %v260, %v259
        %v273 = vpack.c.b16 %v262, %v261
        %v274 = vpack.c.b16 %v264, %v263
        %v275 = vpack.c.b16 %v266, %v265
        %v276 = vpack.c.b16 %v268, %v267
        %285 = vmatprep.subr.bf16.mxu0 0
        %286 = vmatpush1.bf16.msra.mxu0 %v276
        %287 = vmatprep.subr.bf16.mxu0 0
        %288 = vmatpush1.bf16.msra.mxu0 %v275
        %289 = vmatprep.subr.bf16.mxu0 0
        %290 = vmatpush1.bf16.msra.mxu0 %v274
        %291 = vmatprep.subr.bf16.mxu0 0
        %292 = vmatpush1.bf16.msra.mxu0 %v273
        %293 = vmatprep.subr.bf16.mxu0 0
        %294 = vmatpush1.bf16.msra.mxu0 %v272
        %295 = vmatprep.subr.bf16.mxu0 0
        %296 = vmatpush1.bf16.msra.mxu0 %v271
        %297 = vmatprep.subr.bf16.mxu0 0
        %298 = vmatpush1.bf16.msra.mxu0 %v270
        %299 = vmatprep.subr.bf16.mxu0 0
        %300 = vmatpush1.bf16.msra.mxu0 %v269
        %301 = vmatprep.subr.bf16.mxu0 0
        %302 = vmatpush2.bf16.msra.mxu0 0
        %303 = vmatprep.subr.bf16.mxu0 0
        %304 = vmatpush2.bf16.msra.mxu0 0
        %305 = vmatprep.subr.bf16.mxu0 0
        %306 = vmatpush2.bf16.msra.mxu0 0
        %307 = vmatprep.subr.bf16.mxu0 0
        %308 = vmatpush2.bf16.msra.mxu0 0
        %309 = vmatprep.subr.bf16.mxu0 0
        %310 = vmatpush2.bf16.msra.mxu0 0
        %311 = vmatprep.subr.bf16.mxu0 0
        %312 = vmatpush2.bf16.msra.mxu0 0
        %313 = vmatprep.subr.bf16.mxu0 0
        %314 = vmatpush2.bf16.msra.mxu0 0
        %315 = vmatprep.subr.bf16.mxu0 0
        %316 = vmatpush2.bf16.msra.mxu0 0
        %317 = vmatprep.mubr.bf16.mxu0 0
        %318 = vmatmul.mubr.bf16.gmra.mxu0 %v213
        %v319 = vpop.f32.mrf.mxu0
        %v320 = vadd.f32 %v235, %v319
        %v321 = vpop.f32.mrf.mxu0
        %v322 = vpop.f32.mrf.mxu0
        %v323 = vpop.f32.mrf.mxu0
        %324 = vdwg.mxu0
        %v325 = vxor.u32 %v320, 2147483648
        %v326 = vmul.f32 %v325, 1.442695
        %v327 = vpow.pop %v326
        %v328 = vadd.f32 %v327, 1.0
        %v329 = vrcp.pop %v328
        %v330 = vmul.f32 1.0, %v329
        %v331 = vmul.f32 %v212, %v330
        %332 = vst [vmem:[%s199] sm:$0xff] %v331
        %s333 = sand.u32 %s117, 1
        %s334 = scalar_lea.sflag [#allocation3], %s333
        %s335 = sand.u32 %s117, 1
        %s336 = smul.addr %s335, 8
        %s337 = scalar_lea.vmem [#allocation2], %s336
        // Predicated region
        $region33: #{gating_context.1} parent=31 // pred_check
          %p338 = pneg %p127
        $region34: #{gating_context.1} parent=31 // pred_check_branch
          %340 = sbr.rel (%p338) target = $region36
        $region35: #{gating_context.1} parent=31 // pred_region
          %s342 = ssub.s32 128, 128
          %343 = vsyncadd %s334, %s342
          %s344 = sadd.s32 %s22, %s21
          %s345 = smul.addr %s344, 128
          %s346 = scalar_lea.hbm %s3, %s345
          %s348 = sshll.u32 %s337, 4
          %s349 = int_to_ptr.vmem [resolvable:$true] %s348
          %351 = dma.vmem_to_hbm [thread:$0]  %s349, 128, %s346, %s334
        $region36: #{gating_context.1} parent=31 // pred_fallthru
          _
      $region32: #{gating_context.1} parent=5 // pred_fallthru
        _
      %p352 = scmp.le.s32.totalorder 2, %s12
      // Predicated region
      $region37: #{gating_context.1} parent=5 // pred_check
        %p353 = pneg %p352
      $region38: #{gating_context.1} parent=5 // pred_check_branch
        %355 = sbr.rel (%p353) target = $region40
      $region39: #{gating_context.1} parent=5 // pred_region
        %s356 = ssub.s32 %s12, 2
        // Predicated region
        $region41: #{gating_context.1} parent=39 // pred_check
          %p357 = pneg %p133
        $region42: #{gating_context.1} parent=39 // pred_check_branch
          %359 = sbr.rel (%p357) target = $region44
        $region43: #{gating_context.1} parent=39 // pred_region
          %s360 = sand.u32 %s118, 1
          %s361 = scalar_lea.sflag [#allocation3], %s360
          %s362 = sand.u32 %s118, 1
          %s363 = smul.addr %s362, 8
          %s364 = scalar_lea.vmem [#allocation2], %s363
          %365 = dma.done %s361, 128
        $region44: #{gating_context.1} parent=39 // pred_fallthru
          _
      $region40: #{gating_context.1} parent=5 // pred_fallthru
        _
    $region6: #{gating_context.1} parent=1 // loop_footer
      %s16 = sadd.s32 1, %s12
    $region7: #{gating_context.1} parent=1 // loop_footer_branch
      %11 = sbr.rel target = $region3
    $region8: #{gating_context.1} parent=1 // loop_exit
      _
    %366 = vsyncpa [#allocation3], 1
    %s367 = scalar_lea.sflag [#allocation3], 1
    %368 = vsyncpa %s367, 1

</llo_original>
